<compile_context>
chip_gen: v7x
topology: tpu7x:2x2x1
jax: 0.10.0
libtpu: 0.0.40
codegen_flags: <defaults>
</compile_context>

<pallas_src>
import functools

import jax
import jax.numpy as jnp
from jax.experimental import pallas as pl
from jax.experimental.pallas import tpu as pltpu

_LANES = 128
_SUBLANES = 8
_TARGET_TILE_BYTES = 4 << 20    # ~4 MiB streamed tile: >=85% HBM roofline
_VMEM_BUDGET_BYTES = 24 << 20   # headroom under the 32 MiB default scoped VMEM


def _round_up(x, m):
    return ((x + m - 1) // m) * m


def _floor_to(x, m):
    return (x // m) * m


def _bce_partial_kernel(x_ref, t_ref, o_ref, *, block_rows, block_cols,
                        n_rows, n_cols, mask_rows, mask_cols):
    """Unweighted BCE-with-logits on one tile -> (8, block_cols) partial sum."""
    x = x_ref[...].astype(jnp.float32)
    t = t_ref[...].astype(jnp.float32)

    # Numerically stable BCE with logits (matches PyTorch):
    #   max(x, 0) - x*t + log1p(exp(-|x|))
    loss = jnp.maximum(x, 0.0) - x * t + jnp.log1p(jnp.exp(-jnp.abs(x)))

    if mask_rows:
        # Zero rows that exist only because of the ragged last row block.
        row0 = pl.program_id(0) * block_rows
        rows = row0 + jax.lax.broadcasted_iota(jnp.int32, loss.shape, 0)
        loss = jnp.where(rows < n_rows, loss, 0.0)
    if mask_cols:
        # Zero columns past C in the ragged last column block (wide-C path).
        col0 = pl.program_id(1) * block_cols
        cols = col0 + jax.lax.broadcasted_iota(jnp.int32, loss.shape, 1)
        loss = jnp.where(cols < n_cols, loss, 0.0)

    br, bc = loss.shape
    # Reduce groups of 8-row sublane tiles with pure VALU vreg adds (no
    # cross-lane work); the final tiny reduction happens in plain JAX.
    o_ref[...] = jnp.sum(loss.reshape(br // _SUBLANES, _SUBLANES, bc), axis=0)


def _pick_blocks(n, c, in_itemsize):
    """Pick (block_rows, block_cols) from a per-element VMEM byte budget."""
    # 2 streamed inputs x 2 pipeline buffers at the HBM dtype, plus ~3 f32
    # intermediates (x/t casts + loss) materialized inside the kernel body.
    per_elem = 4 * in_itemsize + 3 * 4

    # Column tiling only when even an 8-row full-C tile would blow the budget.
    if _SUBLANES * c * per_elem <= _VMEM_BUDGET_BYTES:
        block_cols = c                       # full-C block: no 128 constraint
    else:
        block_cols = max(
            _LANES,
            _floor_to(_VMEM_BUDGET_BYTES // (_SUBLANES * per_elem), _LANES))

    rows = min(_TARGET_TILE_BYTES // (block_cols * in_itemsize),
               _VMEM_BUDGET_BYTES // (block_cols * per_elem))
    rows = max(_SUBLANES, _floor_to(int(rows), _SUBLANES))

    # Keep the grid several row-blocks long when N allows (v7x has 2 TCs; a
    # 1-long grid leaves one idle).  No divisor-of-N search: pl.cdiv + mask.
    n8 = _round_up(n, _SUBLANES)
    for desired_blocks in (8, 2):
        cap = _floor_to(n8 // desired_blocks, _SUBLANES)
        if cap >= _SUBLANES:
            rows = min(rows, cap)
            break
    rows = min(rows, n8)
    return rows, block_cols


def bce_with_logits_loss(x, target, weight=None, *, ratio=1.0,
                         reduction="mean", _block_override=None):
    """ratio * reduce(weight * BCEWithLogits(x, target)) computed in Pallas."""
    assert x.shape == target.shape and x.ndim == 2
    if reduction not in ("mean", "sum"):
        # TODO(synk): reduction='none' (element-wise output) not emitted by
        # this reduced-output kernel.
        raise NotImplementedError(f"reduction={reduction!r} not supported")
    n, c = x.shape

    if _block_override is not None:
        block_rows, block_cols = _block_override
    else:
        block_rows, block_cols = _pick_blocks(n, c, x.dtype.itemsize)

    num_row_blocks = pl.cdiv(n, block_rows)
    num_col_blocks = pl.cdiv(c, block_cols)
    mask_rows = (num_row_blocks * block_rows != n)
    mask_cols = (num_col_blocks * block_cols != c)

    kernel = functools.partial(
        _bce_partial_kernel,
        block_rows=block_rows, block_cols=block_cols,
        n_rows=n, n_cols=c,
        mask_rows=mask_rows, mask_cols=mask_cols,
    )

    # VMEM limit from the real footprint (streamed buffers + f32 temps + out).
    per_elem = 4 * x.dtype.itemsize + 3 * 4
    est = per_elem * block_rows * block_cols + 2 * _SUBLANES * block_cols * 4
    vmem_limit = int(min(max(est + (4 << 20), 16 << 20), 32 << 20))

    partials = pl.pallas_call(
        kernel,
        out_shape=jax.ShapeDtypeStruct(
            (num_row_blocks * _SUBLANES, num_col_blocks * block_cols),
            jnp.float32),
        grid_spec=pltpu.PrefetchScalarGridSpec(
            num_scalar_prefetch=0,
            grid=(num_row_blocks, num_col_blocks),
            in_specs=[
                pl.BlockSpec((block_rows, block_cols), lambda i, j: (i, j)),
                pl.BlockSpec((block_rows, block_cols), lambda i, j: (i, j)),
            ],
            out_specs=pl.BlockSpec((_SUBLANES, block_cols),
                                   lambda i, j: (i, j)),
        ),
        compiler_params=pltpu.CompilerParams(
            dimension_semantics=("parallel", "parallel"),
            vmem_limit_bytes=vmem_limit,
        ),
    )(x, target)

    # Tiny epilogue in plain JAX: per-column sums, then the per-class weight
    # (hoisted out of the hot loop entirely), then the reduction + ratio.
    col_sums = jnp.sum(partials, axis=0, dtype=jnp.float32)[:c]
    if weight is None:
        total = jnp.sum(col_sums)
    else:
        w = weight.astype(jnp.float32).reshape(-1)
        assert w.shape[0] == c, "weight must be per-class with length C"
        total = jnp.dot(col_sums, w)

    scale = ratio / (n * c) if reduction == "mean" else ratio
    return scale * total


class BCEWithLogitsLoss:
    """Mirror of the mmfashion module's forward pass."""

    def __init__(self, ratio=1.0, weight=None, size_average=None, reduce=None,
                 reduction="mean"):
        del size_average, reduce  # superseded by `reduction` (as in PyTorch)
        self.ratio = ratio
        self.weight = weight
        self.reduction = reduction

    def __call__(self, input, target):
        return bce_with_logits_loss(input, target, self.weight,
                                    ratio=self.ratio,
                                    reduction=self.reduction)


def _reference(x, target, weight, ratio, reduction="mean"):
    x = x.astype(jnp.float32)
    t = target.astype(jnp.float32)
    loss = jnp.maximum(x, 0.0) - x * t + jnp.log1p(jnp.exp(-jnp.abs(x)))
    if weight is not None:
        loss = loss * weight.astype(jnp.float32).reshape(1, -1)
    return ratio * (jnp.mean(loss) if reduction == "mean" else jnp.sum(loss))


if __name__ == "__main__":
    key = jax.random.PRNGKey(0)

    # Case 1: tile-aligned f32 (attribute-prediction style: batch x classes),
    # per-class weight, called through the module-style wrapper.
    N, C = 16, 256
    k1, k2, k3, key = jax.random.split(key, 4)
    x = jax.random.normal(k1, (N, C), dtype=jnp.float32)
    t = (jax.random.uniform(k2, (N, C)) > 0.5).astype(jnp.float32)
    w = jax.random.uniform(k3, (C,), minval=0.5, maxval=1.5, dtype=jnp.float32)
    crit = BCEWithLogitsLoss(ratio=0.5, weight=w, size_average=None,
                             reduce=None, reduction="mean")
    out = jax.block_until_ready(crit(x, t))
    ref = _reference(x, t, w, 0.5, "mean")
    assert jnp.allclose(out, ref, rtol=2e-5, atol=1e-6), (out, ref)

    # Case 2: unaligned N and C — ragged last row block (in-kernel mask, no
    # jnp.pad) and a full-C (200-wide) lane block.
    N2, C2 = 10, 200
    k1, k2, k3, key = jax.random.split(key, 4)
    x2 = jax.random.normal(k1, (N2, C2), dtype=jnp.float32)
    t2 = (jax.random.uniform(k2, (N2, C2)) > 0.5).astype(jnp.float32)
    w2 = jax.random.uniform(k3, (C2,), minval=0.5, maxval=1.5,
                            dtype=jnp.float32)
    out2 = jax.block_until_ready(
        bce_with_logits_loss(x2, t2, w2, ratio=0.5))
    ref2 = _reference(x2, t2, w2, 0.5, "mean")
    assert jnp.allclose(out2, ref2, rtol=2e-5, atol=1e-6), (out2, ref2)

    # Case 3: force the wide-C column-tiling path (2-D grid, ragged rows AND
    # columns), bf16 inputs, no weight, reduction='sum'.
    N3, C3 = 12, 300
    k1, k2, key = jax.random.split(key, 3)
    x3 = jax.random.normal(k1, (N3, C3), dtype=jnp.float32).astype(jnp.bfloat16)
    t3 = (jax.random.uniform(k2, (N3, C3)) > 0.5).astype(jnp.bfloat16)
    out3 = jax.block_until_ready(
        bce_with_logits_loss(x3, t3, None, ratio=1.0, reduction="sum",
                             _block_override=(8, 128)))
    ref3 = _reference(x3, t3, None, 1.0, "sum")
    assert jnp.allclose(out3, ref3, rtol=2e-5, atol=1e-5), (out3, ref3)

    print("KERNEL_OK")
</pallas_src>

<mosaic_0001>
module attributes {stable_mosaic.version = 11 : i64} {
  func.func @_bce_partial_kernel(%arg0: i32, %arg1: i32, %arg2: memref<8x256xf32, #tpu.memory_space<vmem>>, %arg3: memref<8x256xf32, #tpu.memory_space<vmem>>, %arg4: memref<8x256xf32, #tpu.memory_space<vmem>>) attributes {dimension_semantics = [#tpu.dimension_semantics<parallel>, #tpu.dimension_semantics<parallel>], iteration_bounds = array<i64: 2, 1>, scalar_prefetch = 0 : i64, scratch_operands = 0 : i64, tpu.core_type = #tpu.core_type<tc>, window_params = [{transform_indices = @transform_0, window_bounds = array<i64: 8, 256>}, {transform_indices = @transform_1, window_bounds = array<i64: 8, 256>}, {transform_indices = @transform_2, window_bounds = array<i64: 8, 256>}]} {
    %c0 = arith.constant 0 : index
    %c0_0 = arith.constant 0 : index
    %0 = vector.load %arg2[%c0, %c0_0] : memref<8x256xf32, #tpu.memory_space<vmem>>, vector<8x256xf32>
    %c0_1 = arith.constant 0 : index
    %c0_2 = arith.constant 0 : index
    %1 = vector.load %arg3[%c0_1, %c0_2] : memref<8x256xf32, #tpu.memory_space<vmem>>, vector<8x256xf32>
    %cst = arith.constant 0.000000e+00 : f32
    %2 = vector.broadcast %cst : f32 to vector<8x256xf32>
    %3 = arith.maximumf %0, %2 : vector<8x256xf32>
    %4 = arith.mulf %0, %1 : vector<8x256xf32>
    %5 = arith.subf %3, %4 : vector<8x256xf32>
    %6 = math.absf %0 : vector<8x256xf32>
    %cst_3 = arith.constant 0.000000e+00 : f32
    %7 = vector.broadcast %cst_3 : f32 to vector<8x256xf32>
    %8 = arith.subf %7, %6 : vector<8x256xf32>
    %9 = math.exp %8 : vector<8x256xf32>
    %10 = math.log1p %9 : vector<8x256xf32>
    %11 = arith.addf %5, %10 : vector<8x256xf32>
    %12 = vector.shape_cast %11 : vector<8x256xf32> to vector<1x8x256xf32>
    %cst_4 = arith.constant dense<0.000000e+00> : vector<8x256xf32>
    %13 = vector.multi_reduction <add>, %12, %cst_4 [0] : vector<1x8x256xf32> to vector<8x256xf32>
    %c0_5 = arith.constant 0 : index
    %c0_6 = arith.constant 0 : index
    %14 = vector.load %arg4[%c0_5, %c0_6] : memref<8x256xf32, #tpu.memory_space<vmem>>, vector<8x256xf32>
    tpu.vector_store %arg4[%c0_5, %c0_6], %13 {strides = array<i32>} : memref<8x256xf32, #tpu.memory_space<vmem>>, vector<8x256xf32>,
    return
  }
  func.func @transform_0(%arg0: i32, %arg1: i32) -> (i32, i32) {
    %c0_i32 = arith.constant 0 : i32
    return %arg0, %arg1 : i32, i32
  }
  func.func @transform_1(%arg0: i32, %arg1: i32) -> (i32, i32) {
    %c0_i32 = arith.constant 0 : i32
    return %arg0, %arg1 : i32, i32
  }
  func.func @transform_2(%arg0: i32, %arg1: i32) -> (i32, i32) {
    %c0_i32 = arith.constant 0 : i32
    return %arg0, %arg1 : i32, i32
  }
}

</mosaic_0001>

<llo_original>
// kernel: tpu_custom_call.1
$region0: #{tpu_custom_call.1}
  #allocation0 [shape = 'u32[]', space=smem, size = 0x4, offset = 0x4, fixed_abs, tag = 'smem constant byte address 0x4 - core index']
  #allocation1 [shape = 'u32[144,128]{1,0:T(1,128)}', space=vmem, size = 0x12000, scoped, tag = 'internal scratch']
  %s0 = inlined_call_operand.hbm [shape: f32[16,256], index: 0, kind: input, shape index: {}]
  %s1 = inlined_call_operand.hbm [shape: f32[16,256], index: 1, kind: input, shape index: {}]
  %s2 = inlined_call_operand.hbm [shape: f32[16,256], index: 2, kind: output, shape index: {}]
  %s3 = sld [smem:[#allocation0]]
  $region49: #{tpu_custom_call.1} parent=0
    _
  %s5 = ssub.s32 1, %s3
  %s6 = scalar_select 0, %s5, %s3
  $region1: #{tpu_custom_call.1} parent=0
    #allocation2 [shape = 'u8[16384]{0}', space=vmem, size = 0x4000, scoped, tag = 'input window, operand 0']
    #allocation3 [shape = 's32[2]{0}', space=sflag, size = 0x8, scoped, tag = 'scoped memory for tpu_custom_call.1']
    #allocation4 [shape = 's32[2]{0}', space=sflag, size = 0x8, scoped, tag = 'scoped memory for tpu_custom_call.1']
    #allocation5 [shape = 'u8[16384]{0}', space=vmem, size = 0x4000, scoped, tag = 'input window, operand 1']
    #allocation6 [shape = 's32[2]{0}', space=sflag, size = 0x8, scoped, tag = 'scoped memory for tpu_custom_call.1']
    #allocation7 [shape = 'u8[16384]{0}', space=vmem, size = 0x4000, scoped, tag = 'output window, operand 0']
    %7 = vsyncpa [#allocation3], 0
    %s8 = scalar_lea.sflag [#allocation3], 1
    %9 = vsyncpa %s8, 0
    %10 = vsyncpa [#allocation6], 0
    %s11 = scalar_lea.sflag [#allocation6], 1
    %12 = vsyncpa %s11, 0
    %13 = vsyncpa [#allocation4], 0
    %s14 = scalar_lea.sflag [#allocation4], 1
    %15 = vsyncpa %s14, 0
    loop: start=0, step=1, limit=4
    $region2: #{tpu_custom_call.1} parent=1 // loop_pre_header
      _
    $region3: #{tpu_custom_call.1} parent=1 // loop_header
      %s17 = sphi 0, %s21
      %p18 = scmp.ge.s32.totalorder %s17, 4
      %s24 = sphi 0, %s36
      %s25 = sphi 0, %s32
      %s26 = sphi 0, %s24
      %s27 = sphi 0, %s25
      %s28 = sphi 0, %s26
      %s29 = sphi 0, %s27
      %s41 = sphi 0, %s43
      %s44 = sphi 0, %s41
      %s45 = sphi 0, %s44
      %s61 = sphi 0, %s45
      %s69 = sphi 0, %s71
      %s72 = sphi 0, %s69
      %s73 = sphi 0, %s72
      %s89 = sphi 0, %s73
      %s97 = sphi 0, %s99
      %s100 = sphi 0, %s97
      %s101 = sphi 0, %s100
      %s117 = sphi 0, %s101
    $region4: #{tpu_custom_call.1} parent=1 // loop_header_branch
      %20 = sbr.rel (%p18) target = $region8
    $region5: #{tpu_custom_call.1} parent=1 // loop_body
      %s22 = ssub.s32 %s17, 1
      %s23 = ssub.s32 %s17, 2
      %s30 = sadd.s32 1, %s25
      %p31 = scmp.ge.s32.totalorder %s30, 1
      %s32 = scalar_select %p31, 0, %s30
      %s33 = sadd.s32 1, %s24
      %s34 = scalar_select %p31, %s33, %s24
      %p35 = scmp.ge.s32.totalorder %s34, 2
      %s36 = scalar_select %p35, 0, %s34
      %s37 = ssub.s32 %s24, %s36
      %s38 = ssub.s32 %s25, %s32
      %s39 = sor.u32 %s37, %s38
      %p40 = scmp.eq.s32.totalorder %s39, 0
      %s42 = sadd.s32 %s41, 1
      %s43 = scalar_select %p40, %s41, %s42
      %p46 = pneg %p40
      %p47 = scmp.eq.s32.totalorder %s17, 1
      %p48 = por %p46, %p47
      %p49 = scmp.ne.s32.totalorder %s41, %s44
      %p50 = scmp.eq.s32.totalorder %s17, 0
      %p51 = por %p49, %p50
      %p52 = scmp.ne.s32.totalorder %s41, %s44
      %p53 = scmp.eq.s32.totalorder %s22, 1
      %p54 = por %p52, %p53
      %p55 = scmp.ne.s32.totalorder %s44, %s45
      %p56 = scmp.eq.s32.totalorder %s22, 0
      %p57 = por %p55, %p56
      %p58 = scmp.ne.s32.totalorder %s44, %s45
      %p59 = scmp.eq.s32.totalorder %s23, 1
      %p60 = por %p58, %p59
      %p62 = scmp.ne.s32.totalorder %s45, %s61
      %p63 = scmp.eq.s32.totalorder %s23, 0
      %p64 = por %p62, %p63
      %s65 = ssub.s32 %s24, %s36
      %s66 = ssub.s32 %s25, %s32
      %s67 = sor.u32 %s65, %s66
      %p68 = scmp.eq.s32.totalorder %s67, 0
      %s70 = sadd.s32 %s69, 1
      %s71 = scalar_select %p68, %s69, %s70
      %p74 = pneg %p68
      %p75 = scmp.eq.s32.totalorder %s17, 1
      %p76 = por %p74, %p75
      %p77 = scmp.ne.s32.totalorder %s69, %s72
      %p78 = scmp.eq.s32.totalorder %s17, 0
      %p79 = por %p77, %p78
      %p80 = scmp.ne.s32.totalorder %s69, %s72
      %p81 = scmp.eq.s32.totalorder %s22, 1
      %p82 = por %p80, %p81
      %p83 = scmp.ne.s32.totalorder %s72, %s73
      %p84 = scmp.eq.s32.totalorder %s22, 0
      %p85 = por %p83, %p84
      %p86 = scmp.ne.s32.totalorder %s72, %s73
      %p87 = scmp.eq.s32.totalorder %s23, 1
      %p88 = por %p86, %p87
      %p90 = scmp.ne.s32.totalorder %s73, %s89
      %p91 = scmp.eq.s32.totalorder %s23, 0
      %p92 = por %p90, %p91
      %s93 = ssub.s32 %s24, %s36
      %s94 = ssub.s32 %s25, %s32
      %s95 = sor.u32 %s93, %s94
      %p96 = scmp.eq.s32.totalorder %s95, 0
      %s98 = sadd.s32 %s97, 1
      %s99 = scalar_select %p96, %s97, %s98
      %p102 = pneg %p96
      %p103 = scmp.eq.s32.totalorder %s17, 1
      %p104 = por %p102, %p103
      %p105 = scmp.ne.s32.totalorder %s97, %s100
      %p106 = scmp.eq.s32.totalorder %s17, 0
      %p107 = por %p105, %p106
      %p108 = scmp.ne.s32.totalorder %s97, %s100
      %p109 = scmp.eq.s32.totalorder %s22, 1
      %p110 = por %p108, %p109
      %p111 = scmp.ne.s32.totalorder %s100, %s101
      %p112 = scmp.eq.s32.totalorder %s22, 0
      %p113 = por %p111, %p112
      %p114 = scmp.ne.s32.totalorder %s100, %s101
      %p115 = scmp.eq.s32.totalorder %s23, 1
      %p116 = por %p114, %p115
      %p118 = scmp.ne.s32.totalorder %s101, %s117
      %p119 = scmp.eq.s32.totalorder %s23, 0
      %p120 = por %p118, %p119
      %p121 = scmp.le.s32.totalorder 1, %s17
      %p122 = scmp.lt.s32.totalorder %s17, 3
      %p123 = pnand %p121, %p122
      %p124 = pneg %p123
      // Predicated region
      $region9: #{tpu_custom_call.1} parent=5 // pred_check
        _
      $region10: #{tpu_custom_call.1} parent=5 // pred_check_branch
        %126 = sbr.rel (%p123) target = $region12
      $region11: #{tpu_custom_call.1} parent=5 // pred_region
        %s127 = ssub.s32 %s17, 1
      $region12: #{tpu_custom_call.1} parent=5 // pred_fallthru
        _
      %p128 = scmp.lt.s32.totalorder %s17, 2
      // Predicated region
      $region13: #{tpu_custom_call.1} parent=5 // pred_check
        %p129 = pneg %p128
      $region14: #{tpu_custom_call.1} parent=5 // pred_check_branch
        %131 = sbr.rel (%p129) target = $region16
      $region15: #{tpu_custom_call.1} parent=5 // pred_region
        // Predicated region
        $region17: #{tpu_custom_call.1} parent=15 // pred_check
          %p132 = pneg %p51
        $region18: #{tpu_custom_call.1} parent=15 // pred_check_branch
          %134 = sbr.rel (%p132) target = $region20
        $region19: #{tpu_custom_call.1} parent=15 // pred_region
          %s135 = sand.u32 %s41, 1
          %s136 = scalar_lea.sflag [#allocation3], %s135
          %s137 = sand.u32 %s41, 1
          %s138 = smul.addr %s137, 16
          %s139 = scalar_lea.vmem [#allocation2], %s138
          %s140 = smul.u32 2, %s25
          %s142 = ssub.s32 256, 256
          %143 = vsyncadd %s136, %s142
          %s144 = smul.addr %s24, 2
          %s145 = sadd.s32 %s140, %s144
          %s146 = smul.addr %s145, 128
          %s147 = scalar_lea.hbm %s0, %s146
          %s149 = sshll.u32 %s139, 4
          %s150 = int_to_ptr.vmem [resolvable:$true] %s149
          %152 = dma.hbm_to_vmem [thread:$0]  %s147, 256, %s150, %s136
        $region20: #{tpu_custom_call.1} parent=15 // pred_fallthru
          _
        // Predicated region
        $region21: #{tpu_custom_call.1} parent=15 // pred_check
          %p153 = pneg %p79
        $region22: #{tpu_custom_call.1} parent=15 // pred_check_branch
          %155 = sbr.rel (%p153) target = $region24
        $region23: #{tpu_custom_call.1} parent=15 // pred_region
          %s156 = sand.u32 %s69, 1
          %s157 = scalar_lea.sflag [#allocation6], %s156
          %s158 = sand.u32 %s69, 1
          %s159 = smul.addr %s158, 16
          %s160 = scalar_lea.vmem [#allocation5], %s159
          %s161 = smul.u32 2, %s25
          %s163 = ssub.s32 256, 256
          %164 = vsyncadd %s157, %s163
          %s165 = smul.addr %s24, 2
          %s166 = sadd.s32 %s161, %s165
          %s167 = smul.addr %s166, 128
          %s168 = scalar_lea.hbm %s1, %s167
          %s170 = sshll.u32 %s160, 4
          %s171 = int_to_ptr.vmem [resolvable:$true] %s170
          %173 = dma.hbm_to_vmem [thread:$0]  %s168, 256, %s171, %s157
        $region24: #{tpu_custom_call.1} parent=15 // pred_fallthru
          _
      $region16: #{tpu_custom_call.1} parent=5 // pred_fallthru
        _
      %p174 = scmp.le.s32.totalorder 1, %s17
      %p175 = scmp.lt.s32.totalorder %s17, 3
      %p176 = pnand %p174, %p175
      %p177 = pneg %p176
      // Predicated region
      $region25: #{tpu_custom_call.1} parent=5 // pred_check
        _
      $region26: #{tpu_custom_call.1} parent=5 // pred_check_branch
        %179 = sbr.rel (%p176) target = $region28
      $region27: #{tpu_custom_call.1} parent=5 // pred_region
        %s180 = ssub.s32 %s17, 1
        %s181 = sand.u32 %s44, 1
        %s182 = scalar_lea.sflag [#allocation3], %s181
        %s183 = sand.u32 %s44, 1
        %s184 = smul.addr %s183, 16
        %s185 = scalar_lea.vmem [#allocation2], %s184
        // Predicated region
        $region29: #{tpu_custom_call.1} parent=27 // pred_check
          %p186 = pneg %p57
        $region30: #{tpu_custom_call.1} parent=27 // pred_check_branch
          %188 = sbr.rel (%p186) target = $region32
        $region31: #{tpu_custom_call.1} parent=27 // pred_region
          %189 = dma.done %s182, 256
        $region32: #{tpu_custom_call.1} parent=27 // pred_fallthru
          _
        %s190 = sand.u32 %s72, 1
        %s191 = scalar_lea.sflag [#allocation6], %s190
        %s192 = sand.u32 %s72, 1
        %s193 = smul.addr %s192, 16
        %s194 = scalar_lea.vmem [#allocation5], %s193
        // Predicated region
        $region33: #{tpu_custom_call.1} parent=27 // pred_check
          %p195 = pneg %p85
        $region34: #{tpu_custom_call.1} parent=27 // pred_check_branch
          %197 = sbr.rel (%p195) target = $region36
        $region35: #{tpu_custom_call.1} parent=27 // pred_region
          %198 = dma.done %s191, 256
        $region36: #{tpu_custom_call.1} parent=27 // pred_fallthru
          _
        %s199 = sand.u32 %s44, 1
        %s200 = scalar_lea.sflag [#allocation3], %s199
        %s201 = sand.u32 %s44, 1
        %s202 = smul.addr %s201, 16
        %s203 = scalar_lea.vmem [#allocation2], %s202
        %p204 = pneg %p57
        %p205 = pneg %p54
        %s206 = sand.u32 %s72, 1
        %s207 = scalar_lea.sflag [#allocation6], %s206
        %s208 = sand.u32 %s72, 1
        %s209 = smul.addr %s208, 16
        %s210 = scalar_lea.vmem [#allocation5], %s209
        %p211 = pneg %p85
        %p212 = pneg %p82
        %p213 = pneg %p113
        %p214 = pneg %p110
        %s215 = sand.u32 %s100, 1
        %s216 = scalar_lea.sflag [#allocation4], %s215
        %s217 = sand.u32 %s100, 1
        %s218 = smul.addr %s217, 16
        %s219 = scalar_lea.vmem [#allocation7], %s218
        %s220 = smul.u32 2, %s27
        %s221 = smul.u32 2, %s27
        %s222 = smul.u32 2, %s27
        %v223 = vld [vmem:[%s185] sm:$0xff]
        %v224 = vld [vmem:[%s185 + $0x8] sm:$0xff]
        %v225 = vld [vmem:[%s194] sm:$0xff]
        %v226 = vld [vmem:[%s194 + $0x8] sm:$0xff]
        %v227 = vmax.f32 %v223, 0.0
        %v228 = vmax.f32 %v224, 0.0
        %v229 = vmul.f32 %v223, %v225
        %v230 = vmul.f32 %v224, %v226
        %v231 = vsub.f32 %v227, %v229
        %v232 = vsub.f32 %v228, %v230
        %v233 = vand.u32 2147483647, %v223
        %v234 = vand.u32 2147483647, %v224
        %v235 = vsub.f32 0.0, %v233
        %v236 = vsub.f32 0.0, %v234
        %v237 = vmul.f32 %v235, 1.442695
        %v238 = vpow.pop %v237
        %v239 = vmul.f32 %v236, 1.442695
        %v240 = vpow.pop %v239
        %v241 = vadd.f32 %v238, 1.0
        %v242 = vlog2.pop %v241
        %v243 = vmul.f32 %v242, 0.6931472
        %v244 = vmul.f32 -0.5, %v238
        %v245 = vadd.f32 %v244, 1.0
        %v246 = vmul.f32 %v245, %v238
        %v247 = vand.u32 2147483647, %v238
        %vm248 = vcmp.lt.f32.partialorder %v247, 0.0004427343
        %v249 = vsel %vm248, %v246, %v243
        %v250 = vadd.f32 %v240, 1.0
        %v251 = vlog2.pop %v250
        %v252 = vmul.f32 %v251, 0.6931472
        %v253 = vmul.f32 -0.5, %v240
        %v254 = vadd.f32 %v253, 1.0
        %v255 = vmul.f32 %v254, %v240
        %v256 = vand.u32 2147483647, %v240
        %vm257 = vcmp.lt.f32.partialorder %v256, 0.0004427343
        %v258 = vsel %vm257, %v255, %v252
        %v259 = vadd.f32 %v231, %v249
        %v260 = vadd.f32 %v232, %v258
        %v261 = vadd.f32 %v259, 0.0
        %v262 = vadd.f32 %v260, 0.0
        %263 = vst [vmem:[%s219] sm:$0xff] %v261
        %264 = vst [vmem:[%s219 + $0x8] sm:$0xff] %v262
        %s265 = sand.u32 %s100, 1
        %s266 = scalar_lea.sflag [#allocation4], %s265
        %s267 = sand.u32 %s100, 1
        %s268 = smul.addr %s267, 16
        %s269 = scalar_lea.vmem [#allocation7], %s268
        // Predicated region
        $region37: #{tpu_custom_call.1} parent=27 // pred_check
          %p270 = pneg %p110
        $region38: #{tpu_custom_call.1} parent=27 // pred_check_branch
          %272 = sbr.rel (%p270) target = $region40
        $region39: #{tpu_custom_call.1} parent=27 // pred_region
          %s273 = smul.u32 2, %s27
          %s275 = ssub.s32 256, 256
          %276 = vsyncadd %s266, %s275
          %s277 = smul.addr %s26, 2
          %s278 = sadd.s32 %s273, %s277
          %s279 = smul.addr %s278, 128
          %s280 = scalar_lea.hbm %s2, %s279
          %s282 = sshll.u32 %s269, 4
          %s283 = int_to_ptr.vmem [resolvable:$true] %s282
          %285 = dma.vmem_to_hbm [thread:$0]  %s283, 256, %s280, %s266
        $region40: #{tpu_custom_call.1} parent=27 // pred_fallthru
          _
      $region28: #{tpu_custom_call.1} parent=5 // pred_fallthru
        _
      %p286 = scmp.le.s32.totalorder 2, %s17
      // Predicated region
      $region41: #{tpu_custom_call.1} parent=5 // pred_check
        %p287 = pneg %p286
      $region42: #{tpu_custom_call.1} parent=5 // pred_check_branch
        %289 = sbr.rel (%p287) target = $region44
      $region43: #{tpu_custom_call.1} parent=5 // pred_region
        %s290 = ssub.s32 %s17, 2
        // Predicated region
        $region45: #{tpu_custom_call.1} parent=43 // pred_check
          %p291 = pneg %p116
        $region46: #{tpu_custom_call.1} parent=43 // pred_check_branch
          %293 = sbr.rel (%p291) target = $region48
        $region47: #{tpu_custom_call.1} parent=43 // pred_region
          %s294 = sand.u32 %s101, 1
          %s295 = scalar_lea.sflag [#allocation4], %s294
          %s296 = sand.u32 %s101, 1
          %s297 = smul.addr %s296, 16
          %s298 = scalar_lea.vmem [#allocation7], %s297
          %299 = dma.done %s295, 256
        $region48: #{tpu_custom_call.1} parent=43 // pred_fallthru
          _
      $region44: #{tpu_custom_call.1} parent=5 // pred_fallthru
        _
    $region6: #{tpu_custom_call.1} parent=1 // loop_footer
      %s21 = sadd.s32 1, %s17
    $region7: #{tpu_custom_call.1} parent=1 // loop_footer_branch
      %16 = sbr.rel target = $region3
    $region8: #{tpu_custom_call.1} parent=1 // loop_exit
      _
    %300 = vsyncpa [#allocation3], 1
    %s301 = scalar_lea.sflag [#allocation3], 1
    %302 = vsyncpa %s301, 1
    %303 = vsyncpa [#allocation6], 1
    %s304 = scalar_lea.sflag [#allocation6], 1
    %305 = vsyncpa %s304, 1
    %306 = vsyncpa [#allocation4], 1
    %s307 = scalar_lea.sflag [#allocation4], 1
    %308 = vsyncpa %s307, 1

</llo_original>
